<compile_context>
chip_gen: v5e
topology: v5e:2x2
jax: 0.10.0
libtpu: 0.0.40
codegen_flags: <defaults>
</compile_context>

<pallas_src>
import functools

import jax
import jax.numpy as jnp
from jax.experimental import pallas as pl
from jax.experimental.pallas import tpu as pltpu

LANE = 128      # vreg lane width (last dim)
SUBLANE = 8     # vreg sublane width (second-to-last dim)


def _round_up(n, m):
    return ((n + m - 1) // m) * m


def qnetwork_kernel(x_ref, w1_ref, b1_ref, w2_ref, b2_ref, out_ref):
    """Fused forward on one batch tile: out = relu(x @ W1 + b1) @ W2 + b2."""
    x = x_ref[...]                                       # [TB, S]
    h = jnp.dot(x, w1_ref[...],
                preferred_element_type=jnp.float32)      # [TB, HP]  (MXU)
    h = jnp.maximum(h + b1_ref[...], 0.0)                # bias + ReLU (VPU)
    o = jnp.dot(h, w2_ref[...],
                preferred_element_type=jnp.float32)      # [TB, AP]  (MXU)
    out_ref[...] = (o + b2_ref[...]).astype(out_ref.dtype)


@functools.partial(jax.jit, static_argnames=("tb",))
def qnetwork_forward(x, w1, b1, w2, b2, *, tb=512):
    """Forward pass.

    x:  [B, S]      activations
    w1: [S, H]      fc weight   (stored [in, out]; transpose of torch's [out, in])
    b1: [H] / [1,H] fc bias
    w2: [H, A]      fc2 weight  (stored [in, out])
    b2: [A] / [1,A] fc2 bias
    """
    B, S = x.shape
    H = w1.shape[1]
    A = w2.shape[1]

    # Lane-dense zero padding of hidden / action dims (exact math, see header).
    HP = _round_up(H, LANE)
    AP = _round_up(A, LANE)
    w1p = jnp.pad(w1.astype(jnp.float32), ((0, 0), (0, HP - H)))
    b1p = jnp.pad(b1.reshape(1, -1).astype(jnp.float32), ((0, 0), (0, HP - H)))
    w2p = jnp.pad(w2.astype(jnp.float32), ((0, HP - H), (0, AP - A)))
    b2p = jnp.pad(b2.reshape(1, -1).astype(jnp.float32), ((0, 0), (0, AP - A)))

    # Batch tile: sublane-aligned, capped at `tb` rows.  VMEM footprint is
    # ~ 2*TB*S*4 + 2*TB*AP*4 (double-buffered x/out tiles) + the resident
    # padded weights (S*HP + HP*AP + HP + AP floats) -- well under any chip
    # generation's scoped-VMEM limit at these shapes.
    TB = min(tb, _round_up(B, SUBLANE))
    grid = (pl.cdiv(B, TB),)

    out_p = pl.pallas_call(
        qnetwork_kernel,
        out_shape=jax.ShapeDtypeStruct((B, AP), jnp.float32),
        grid=grid,
        in_specs=[
            pl.BlockSpec((TB, S), lambda i: (i, 0)),     # x: streamed per tile
            pl.BlockSpec((S, HP), lambda i: (0, 0)),     # W1: VMEM-resident
            pl.BlockSpec((1, HP), lambda i: (0, 0)),     # b1: VMEM-resident
            pl.BlockSpec((HP, AP), lambda i: (0, 0)),    # W2: VMEM-resident
            pl.BlockSpec((1, AP), lambda i: (0, 0)),     # b2: VMEM-resident
        ],
        out_specs=pl.BlockSpec((TB, AP), lambda i: (i, 0)),
        compiler_params=pltpu.CompilerParams(
            dimension_semantics=("parallel",)),          # v7x: 2 TCs share batch
    )(x.astype(jnp.float32), w1p, b1p, w2p, b2p)

    return out_p[:, :A]


def init_qnetwork_params(key, state_size, hidden_size, action_size):
    """Deterministic init mimicking nn.Linear default (U[-1/sqrt(fan_in), +])."""
    k1, k2, k3, k4 = jax.random.split(key, 4)
    bound1 = 1.0 / jnp.sqrt(state_size)
    bound2 = 1.0 / jnp.sqrt(hidden_size)
    # Stored as [in, out] (transposed relative to PyTorch's [out, in]).
    w1 = jax.random.uniform(k1, (state_size, hidden_size), jnp.float32,
                            -bound1, bound1)
    b1 = jax.random.uniform(k2, (1, hidden_size), jnp.float32,
                            -bound1, bound1)
    w2 = jax.random.uniform(k3, (hidden_size, action_size), jnp.float32,
                            -bound2, bound2)
    b2 = jax.random.uniform(k4, (1, action_size), jnp.float32,
                            -bound2, bound2)
    return w1, b1, w2, b2


if __name__ == "__main__":
    # Small shapes consistent with the module's forward (x: [batch, state_size]).
    batch = 8
    state_size = 16
    hidden_size = 32
    action_size = 8

    key = jax.random.PRNGKey(0)
    kx, kp = jax.random.split(key)
    x = jax.random.normal(kx, (batch, state_size), jnp.float32)
    w1, b1, w2, b2 = init_qnetwork_params(kp, state_size, hidden_size,
                                          action_size)

    out = qnetwork_forward(x, w1, b1, w2, b2)
    out = jax.block_until_ready(out)

    # Pure-JAX reference check (same math as the torch forward).
    ref = jnp.maximum(x @ w1 + b1, 0.0) @ w2 + b2
    assert out.shape == (batch, action_size)
    assert jnp.allclose(out, ref, atol=1e-5, rtol=1e-5)

    print("KERNEL_OK")
</pallas_src>

<mosaic_0001>
module attributes {stable_mosaic.version = 11 : i64} {
  func.func @qnetwork_kernel(%arg0: i32, %arg1: memref<8x16xf32, #tpu.memory_space<vmem>>, %arg2: memref<16x128xf32, #tpu.memory_space<vmem>>, %arg3: memref<1x128xf32, #tpu.memory_space<vmem>>, %arg4: memref<128x128xf32, #tpu.memory_space<vmem>>, %arg5: memref<1x128xf32, #tpu.memory_space<vmem>>, %arg6: memref<8x128xf32, #tpu.memory_space<vmem>>) attributes {dimension_semantics = [#tpu.dimension_semantics<parallel>], iteration_bounds = array<i64: 1>, scalar_prefetch = 0 : i64, scratch_operands = 0 : i64, tpu.core_type = #tpu.core_type<tc>, window_params = [{transform_indices = @transform_0, window_bounds = array<i64: 8, 16>}, {pipeline_mode = #tpu.pipeline_mode<synchronous>, transform_indices = @transform_1, window_bounds = array<i64: 16, 128>}, {pipeline_mode = #tpu.pipeline_mode<synchronous>, transform_indices = @transform_2, window_bounds = array<i64: 1, 128>}, {pipeline_mode = #tpu.pipeline_mode<synchronous>, transform_indices = @transform_3, window_bounds = array<i64: 128, 128>}, {pipeline_mode = #tpu.pipeline_mode<synchronous>, transform_indices = @transform_4, window_bounds = array<i64: 1, 128>}, {transform_indices = @transform_5, window_bounds = array<i64: 8, 128>}]} {
    %c0 = arith.constant 0 : index
    %c0_0 = arith.constant 0 : index
    %0 = vector.load %arg1[%c0, %c0_0] : memref<8x16xf32, #tpu.memory_space<vmem>>, vector<8x16xf32>
    %c0_1 = arith.constant 0 : index
    %c0_2 = arith.constant 0 : index
    %1 = vector.load %arg2[%c0_1, %c0_2] : memref<16x128xf32, #tpu.memory_space<vmem>>, vector<16x128xf32>
    %cst = arith.constant dense<0.000000e+00> : vector<8x128xf32>
    %2 = tpu.matmul %0, %1, %cst {dimension_numbers = #tpu.dot_dimension_numbers<[1], [0], [0], [1], [0, 0, 1, 1], [], []>} : vector<8x16xf32>, vector<16x128xf32>, vector<8x128xf32> -> vector<8x128xf32>
    %c0_3 = arith.constant 0 : index
    %c0_4 = arith.constant 0 : index
    %3 = vector.load %arg3[%c0_3, %c0_4] : memref<1x128xf32, #tpu.memory_space<vmem>>, vector<1x128xf32>
    %4 = vector.broadcast %3 : vector<1x128xf32> to vector<8x128xf32>
    %5 = arith.addf %2, %4 : vector<8x128xf32>
    %cst_5 = arith.constant 0.000000e+00 : f32
    %6 = vector.broadcast %cst_5 : f32 to vector<8x128xf32>
    %7 = arith.maximumf %5, %6 : vector<8x128xf32>
    %c0_6 = arith.constant 0 : index
    %c0_7 = arith.constant 0 : index
    %8 = vector.load %arg4[%c0_6, %c0_7] : memref<128x128xf32, #tpu.memory_space<vmem>>, vector<128x128xf32>
    %cst_8 = arith.constant dense<0.000000e+00> : vector<8x128xf32>
    %9 = tpu.matmul %7, %8, %cst_8 {dimension_numbers = #tpu.dot_dimension_numbers<[1], [0], [0], [1], [0, 0, 1, 1], [], []>} : vector<8x128xf32>, vector<128x128xf32>, vector<8x128xf32> -> vector<8x128xf32>
    %c0_9 = arith.constant 0 : index
    %c0_10 = arith.constant 0 : index
    %10 = vector.load %arg5[%c0_9, %c0_10] : memref<1x128xf32, #tpu.memory_space<vmem>>, vector<1x128xf32>
    %11 = vector.broadcast %10 : vector<1x128xf32> to vector<8x128xf32>
    %12 = arith.addf %9, %11 : vector<8x128xf32>
    %c0_11 = arith.constant 0 : index
    %c0_12 = arith.constant 0 : index
    %13 = vector.load %arg6[%c0_11, %c0_12] : memref<8x128xf32, #tpu.memory_space<vmem>>, vector<8x128xf32>
    tpu.vector_store %arg6[%c0_11, %c0_12], %12 {strides = array<i32>} : memref<8x128xf32, #tpu.memory_space<vmem>>, vector<8x128xf32>,
    return
  }
  func.func @transform_0(%arg0: i32) -> (i32, i32) {
    %c0_i32 = arith.constant 0 : i32
    %c0_i32_0 = arith.constant 0 : i32
    return %arg0, %c0_i32 : i32, i32
  }
  func.func @transform_1(%arg0: i32) -> (i32, i32) {
    %c0_i32 = arith.constant 0 : i32
    %c0_i32_0 = arith.constant 0 : i32
    %c0_i32_1 = arith.constant 0 : i32
    return %c0_i32, %c0_i32_0 : i32, i32
  }
  func.func @transform_2(%arg0: i32) -> (i32, i32) {
    %c0_i32 = arith.constant 0 : i32
    %c0_i32_0 = arith.constant 0 : i32
    %c0_i32_1 = arith.constant 0 : i32
    return %c0_i32, %c0_i32_0 : i32, i32
  }
  func.func @transform_3(%arg0: i32) -> (i32, i32) {
    %c0_i32 = arith.constant 0 : i32
    %c0_i32_0 = arith.constant 0 : i32
    %c0_i32_1 = arith.constant 0 : i32
    return %c0_i32, %c0_i32_0 : i32, i32
  }
  func.func @transform_4(%arg0: i32) -> (i32, i32) {
    %c0_i32 = arith.constant 0 : i32
    %c0_i32_0 = arith.constant 0 : i32
    %c0_i32_1 = arith.constant 0 : i32
    return %c0_i32, %c0_i32_0 : i32, i32
  }
  func.func @transform_5(%arg0: i32) -> (i32, i32) {
    %c0_i32 = arith.constant 0 : i32
    %c0_i32_0 = arith.constant 0 : i32
    return %arg0, %c0_i32 : i32, i32
  }
}

</mosaic_0001>

<llo_original>
// kernel: qnetwork_forward.1
$region0: #{qnetwork_forward.1}
  #allocation0 [shape = 'u32[]', space=smem, size = 0x4, offset = 0x4, fixed_abs, tag = 'smem constant byte address 0x4 - core index']
  #allocation1 [shape = 'u32[72,128]{1,0:T(1,128)}', space=vmem, size = 0x9000, scoped, tag = 'internal scratch']
  %s0 = inlined_call_operand.vmem [shape: f32[8,16], index: 0, kind: input, shape index: {}]
  %s1 = inlined_call_operand.vmem [shape: f32[16,128], index: 1, kind: input, shape index: {}]
  %s2 = inlined_call_operand.vmem [shape: f32[1,128], index: 2, kind: input, shape index: {}]
  %s3 = inlined_call_operand.vmem [shape: f32[128,128], index: 3, kind: input, shape index: {}]
  %s4 = inlined_call_operand.vmem [shape: f32[1,128], index: 4, kind: input, shape index: {}]
  %s5 = inlined_call_operand.hbm [shape: f32[8,128], index: 5, kind: output, shape index: {}]
  %s6 = sld [smem:[#allocation0]]
  $region30: #{qnetwork_forward.1} parent=0
    _
  %s8 = ssub.s32 1, %s6
  %s9 = scalar_select 0, %s8, %s6
  $region1: #{qnetwork_forward.1} parent=0
    #allocation2 [shape = 'u8[4096]{0}', space=vmem, size = 0x1000, scoped, tag = 'output window, operand 0, single buffered']
    #allocation3 [shape = 's32[1]{0}', space=sflag, size = 0x4, scoped, tag = 'scoped memory for qnetwork_forward.1']
    %10 = vsyncpa [#allocation3], 0
    // Predicated region
    $region2: #{qnetwork_forward.1} parent=1 // pred_check
      _
    $region3: #{qnetwork_forward.1} parent=1 // pred_check_branch
      %12 = sbr.rel (0) target = $region5
    $region4: #{qnetwork_forward.1} parent=1 // pred_region
      _
    $region5: #{qnetwork_forward.1} parent=1 // pred_fallthru
      _
    // Predicated region
    $region6: #{qnetwork_forward.1} parent=1 // pred_check
      _
    $region7: #{qnetwork_forward.1} parent=1 // pred_check_branch
      %14 = sbr.rel (0) target = $region9
    $region8: #{qnetwork_forward.1} parent=1 // pred_region
      _
    $region9: #{qnetwork_forward.1} parent=1 // pred_fallthru
      _
    // Predicated region
    $region10: #{qnetwork_forward.1} parent=1 // pred_check
      _
    $region11: #{qnetwork_forward.1} parent=1 // pred_check_branch
      %16 = sbr.rel (0) target = $region13
    $region12: #{qnetwork_forward.1} parent=1 // pred_region
      _
    $region13: #{qnetwork_forward.1} parent=1 // pred_fallthru
      _
    // Predicated region
    $region14: #{qnetwork_forward.1} parent=1 // pred_check
      _
    $region15: #{qnetwork_forward.1} parent=1 // pred_check_branch
      %18 = sbr.rel (0) target = $region17
    $region16: #{qnetwork_forward.1} parent=1 // pred_region
      _
    $region17: #{qnetwork_forward.1} parent=1 // pred_fallthru
      _
    // Predicated region
    $region18: #{qnetwork_forward.1} parent=1 // pred_check
      _
    $region19: #{qnetwork_forward.1} parent=1 // pred_check_branch
      %20 = sbr.rel (0) target = $region21
    $region20: #{qnetwork_forward.1} parent=1 // pred_region
      _
    $region21: #{qnetwork_forward.1} parent=1 // pred_fallthru
      _
    %v21 = vld [vmem:[%s0] sm:$0xff]
    %v22 = vld [vmem:[%s1] sm:$0xff]
    %v23 = vld [vmem:[%s1 + $0x8] sm:$0xff]
    %v24 = vld [vmem:[%s2] sm:$0x1]
    %v26 = vperm.slane %v24, 0
    %vm28 = vcmask 130048
    %v30 = vsel %vm28, %v21, 0
    %32 = vmatpush.msra.mxu0 0.0
    %33 = vmatpush.msra.mxu0 0.0
    %34 = vmatpush.msra.mxu0 0.0
    %35 = vmatpush.msra.mxu0 0.0
    %36 = vmatpush.msra.mxu0 0.0
    %37 = vmatpush.msra.mxu0 0.0
    %38 = vmatpush.msra.mxu0 0.0
    %39 = vmatpush.msra.mxu0 0.0
    %40 = vmatpush.msra.mxu0 0.0
    %41 = vmatpush.msra.mxu0 0.0
    %42 = vmatpush.msra.mxu0 0.0
    %43 = vmatpush.msra.mxu0 0.0
    %44 = vmatpush.msra.mxu0 0.0
    %45 = vmatpush.msra.mxu0 0.0
    %46 = vmatpush.msra.mxu0 %v23
    %47 = vmatpush.msra.mxu0 %v22
    %48 = vmatmul.f32.gmra.mxu0 %v30
    %v49 = vpop.f32.mrf.mxu0
    %v50 = vadd.f32 %v26, %v49
    %51 = vdwg.mxu0
    %v52 = vmax.f32 %v50, 0.0
    %v53 = vld [vmem:[%s3] sm:$0xff]
    %v54 = vld [vmem:[%s3 + $0x8] sm:$0xff]
    %v55 = vld [vmem:[%s3 + $0x10] sm:$0xff]
    %v56 = vld [vmem:[%s3 + $0x18] sm:$0xff]
    %v57 = vld [vmem:[%s3 + $0x20] sm:$0xff]
    %v58 = vld [vmem:[%s3 + $0x28] sm:$0xff]
    %v59 = vld [vmem:[%s3 + $0x30] sm:$0xff]
    %v60 = vld [vmem:[%s3 + $0x38] sm:$0xff]
    %v61 = vld [vmem:[%s3 + $0x40] sm:$0xff]
    %v62 = vld [vmem:[%s3 + $0x48] sm:$0xff]
    %v63 = vld [vmem:[%s3 + $0x50] sm:$0xff]
    %v64 = vld [vmem:[%s3 + $0x58] sm:$0xff]
    %v65 = vld [vmem:[%s3 + $0x60] sm:$0xff]
    %v66 = vld [vmem:[%s3 + $0x68] sm:$0xff]
    %v67 = vld [vmem:[%s3 + $0x70] sm:$0xff]
    %v68 = vld [vmem:[%s3 + $0x78] sm:$0xff]
    %v69 = vld [vmem:[%s4] sm:$0x1]
    %v71 = vperm.slane %v69, 0
    %73 = vmatpush.msra.mxu0 %v68
    %74 = vmatpush.msra.mxu0 %v67
    %75 = vmatpush.msra.mxu0 %v66
    %76 = vmatpush.msra.mxu0 %v65
    %77 = vmatpush.msra.mxu0 %v64
    %78 = vmatpush.msra.mxu0 %v63
    %79 = vmatpush.msra.mxu0 %v62
    %80 = vmatpush.msra.mxu0 %v61
    %81 = vmatpush.msra.mxu0 %v60
    %82 = vmatpush.msra.mxu0 %v59
    %83 = vmatpush.msra.mxu0 %v58
    %84 = vmatpush.msra.mxu0 %v57
    %85 = vmatpush.msra.mxu0 %v56
    %86 = vmatpush.msra.mxu0 %v55
    %87 = vmatpush.msra.mxu0 %v54
    %88 = vmatpush.msra.mxu0 %v53
    %89 = vmatmul.f32.gmra.mxu0 %v52
    %v90 = vpop.f32.mrf.mxu0
    %v91 = vadd.f32 %v71, %v90
    %92 = vdwg.mxu0
    %93 = vst [vmem:[#allocation2] sm:$0xff] %v91
    // Predicated region
    $region22: #{qnetwork_forward.1} parent=1 // pred_check
      _
    $region23: #{qnetwork_forward.1} parent=1 // pred_check_branch
      %95 = sbr.rel (0) target = $region25
    $region24: #{qnetwork_forward.1} parent=1 // pred_region
      %97 = vsyncadd [#allocation3], 0
      %s99 = sshll.u32 [#allocation2], 4
      %s100 = int_to_ptr.vmem [resolvable:$true] %s99
      %s101 = sshll.u32 %s5, 4
      %s102 = int_to_ptr.hbm [resolvable:$true] %s101
      %104 = dma.vmem_to_hbm [thread:$0]  %s100, 128, %s102, [#allocation3]
    $region25: #{qnetwork_forward.1} parent=1 // pred_fallthru
      _
    // Predicated region
    $region26: #{qnetwork_forward.1} parent=1 // pred_check
      _
    $region27: #{qnetwork_forward.1} parent=1 // pred_check_branch
      %106 = sbr.rel (0) target = $region29
    $region28: #{qnetwork_forward.1} parent=1 // pred_region
      %108 = dma.done [#allocation3], 128
    $region29: #{qnetwork_forward.1} parent=1 // pred_fallthru
      _
    %109 = vsyncpa [#allocation3], 1

</llo_original>
